<compile_context>
chip_gen: v6e
topology: v6e:2x2x1
jax: 0.10.0
libtpu: 0.0.40
codegen_flags: <defaults>
</compile_context>

<pallas_src>
import jax
import jax.numpy as jnp
from jax.experimental import pallas as pl
from jax.experimental.pallas import tpu as pltpu

_LANE_WIDTHS = (2048, 1024, 512, 256, 128)  # candidate last-dim widths (x128)
_TARGET_TILE_BYTES = 2 << 20                # ~2 MiB per tile


def _identity_kernel(x_ref, o_ref):
    # Bare tile copy; Pallas double-buffers the HBM<->VMEM DMA around this.
    # No extra scratch / deeper buffering: there is no compute to overlap.
    o_ref[...] = x_ref[...]


def _sublane_granule(dtype):
    """Native sublane packing granule for the dtype (vreg is [granule, 128])."""
    itemsize = jnp.dtype(dtype).itemsize
    return {4: 8, 2: 16, 1: 32}.get(itemsize, 8)


def _pick_layout(n, granule):
    """Widest lane-dense (rows, lane_width) view of a flat length-n tensor."""
    for lane_width in _LANE_WIDTHS:
        if n % lane_width == 0:
            rows = n // lane_width
            if rows % granule == 0:
                return rows, lane_width
    return None


def _choose_block_rows(rows, lane_width, itemsize, granule):
    """~2 MiB tiles, but keep >=2 grid steps when possible (v7x megacore)."""
    target_rows = (_TARGET_TILE_BYTES // (lane_width * itemsize)) // granule * granule
    target_rows = max(granule, target_rows)
    if rows > target_rows:
        return target_rows                      # grid has >= 2 steps already
    half = (rows // 2) // granule * granule     # split small-but-nontrivial inputs
    return half if half >= granule else rows


def myloss2_forward(weight):
    """Pallas equivalent of Myloss2.forward: returns `weight` unchanged."""
    orig_shape = weight.shape
    dtype = weight.dtype
    n = weight.size

    if n == 0:
        return weight

    granule = _sublane_granule(dtype)
    layout = _pick_layout(n, granule)
    if layout is None:
        # Non-lane-dense shape: the op is an identity, so the cheapest correct
        # implementation is to move no data at all (review recommendation).
        return weight

    rows, lane_width = layout
    itemsize = jnp.dtype(dtype).itemsize
    block_rows = _choose_block_rows(rows, lane_width, itemsize, granule)
    grid = (pl.cdiv(rows, block_rows),)

    x2d = weight.reshape(rows, lane_width)
    out = pl.pallas_call(
        _identity_kernel,
        out_shape=jax.ShapeDtypeStruct((rows, lane_width), dtype),
        grid=grid,
        in_specs=[pl.BlockSpec((block_rows, lane_width), lambda i: (i, 0))],
        out_specs=pl.BlockSpec((block_rows, lane_width), lambda i: (i, 0)),
        # Output aliases the input buffer: with a donated input this costs no
        # extra HBM allocation and the identity collapses to (at most) one copy.
        input_output_aliases={0: 0},
        compiler_params=pltpu.CompilerParams(
            dimension_semantics=("parallel",),
            vmem_limit_bytes=32 << 20,
        ),
    )(x2d)
    return out.reshape(orig_shape)


if __name__ == "__main__":
    key = jax.random.PRNGKey(0)
    k0, k1, k2 = jax.random.split(key, 3)

    # Small example input consistent with the module (any "weight" tensor).
    # 2*4*16*16 = 2048 elements -> lane-dense (8, 256) tile, single grid step.
    weight = jax.random.normal(k0, (2, 4, 16, 16), jnp.float32)
    out = jax.block_until_ready(myloss2_forward(weight))

    # Slightly larger tensor: 8*32*128 = 32768 elems -> (16, 2048) view split
    # into 2 "parallel" grid steps (exercises the multi-step megacore path).
    w_big = jax.random.normal(k1, (8, 32, 128), jnp.float32)
    out_big = jax.block_until_ready(myloss2_forward(w_big))

    # Odd, non-128-divisible shape: identity returned directly (no copy).
    w_odd = jax.random.normal(k2, (3, 5, 7), jnp.float32)
    out_odd = jax.block_until_ready(myloss2_forward(w_odd))

    assert out.shape == weight.shape and out.dtype == weight.dtype
    assert bool(jnp.all(out == weight))
    assert bool(jnp.all(out_big == w_big))
    assert bool(jnp.all(out_odd == w_odd))

    print("KERNEL_OK")
</pallas_src>

<mosaic_0001>
module attributes {stable_mosaic.version = 11 : i64} {
  func.func @_identity_kernel(%arg0: i32, %arg1: memref<8x256xf32, #tpu.memory_space<vmem>>, %arg2: memref<8x256xf32, #tpu.memory_space<vmem>>) attributes {dimension_semantics = [#tpu.dimension_semantics<parallel>], iteration_bounds = array<i64: 1>, scalar_prefetch = 0 : i64, scratch_operands = 0 : i64, tpu.core_type = #tpu.core_type<tc>, window_params = [{transform_indices = @transform_0, window_bounds = array<i64: 8, 256>}, {transform_indices = @transform_1, window_bounds = array<i64: 8, 256>}]} {
    %c0 = arith.constant 0 : index
    %c0_0 = arith.constant 0 : index
    %0 = vector.load %arg1[%c0, %c0_0] : memref<8x256xf32, #tpu.memory_space<vmem>>, vector<8x256xf32>
    %c0_1 = arith.constant 0 : index
    %c0_2 = arith.constant 0 : index
    %1 = vector.load %arg2[%c0_1, %c0_2] : memref<8x256xf32, #tpu.memory_space<vmem>>, vector<8x256xf32>
    tpu.vector_store %arg2[%c0_1, %c0_2], %0 {strides = array<i32>} : memref<8x256xf32, #tpu.memory_space<vmem>>, vector<8x256xf32>,
    return
  }
  func.func @transform_0(%arg0: i32) -> (i32, i32) {
    %c0_i32 = arith.constant 0 : i32
    %c0_i32_0 = arith.constant 0 : i32
    return %arg0, %c0_i32 : i32, i32
  }
  func.func @transform_1(%arg0: i32) -> (i32, i32) {
    %c0_i32 = arith.constant 0 : i32
    %c0_i32_0 = arith.constant 0 : i32
    return %arg0, %c0_i32 : i32, i32
  }
}

</mosaic_0001>

<llo_original>
// kernel: tpu_custom_call.1
$region0: #{tpu_custom_call.1}
  #allocation0 [shape = 'u32[]', space=smem, size = 0x4, offset = 0x4, fixed_abs, tag = 'smem constant byte address 0x4 - core index']
  #allocation1 [shape = 'u32[144,128]{1,0:T(1,128)}', space=vmem, size = 0x12000, scoped, tag = 'internal scratch']
  %s0 = inlined_call_operand.hbm [shape: f32[8,256], index: 0, kind: input, shape index: {}, may-alias: {0,1}]
  %s1 = inlined_call_operand.hbm [shape: f32[8,256], index: 1, kind: output, shape index: {}, may-alias: {0,1}]
  %s2 = sld [smem:[#allocation0]]
  $region18: #{tpu_custom_call.1} parent=0
    _
  %s4 = ssub.s32 1, %s2
  %s5 = scalar_select 0, %s4, %s2
  $region1: #{tpu_custom_call.1} parent=0
    #allocation2 [shape = 'u8[8192]{0}', space=vmem, size = 0x2000, scoped, tag = 'input window, operand 0, single buffered']
    #allocation3 [shape = 's32[1]{0}', space=sflag, size = 0x4, scoped, tag = 'scoped memory for tpu_custom_call.1']
    #allocation4 [shape = 's32[1]{0}', space=sflag, size = 0x4, scoped, tag = 'scoped memory for tpu_custom_call.1']
    #allocation5 [shape = 'u8[8192]{0}', space=vmem, size = 0x2000, scoped, tag = 'output window, operand 0, single buffered']
    %6 = vsyncpa [#allocation3], 0
    %7 = vsyncpa [#allocation4], 0
    // Predicated region
    $region2: #{tpu_custom_call.1} parent=1 // pred_check
      _
    $region3: #{tpu_custom_call.1} parent=1 // pred_check_branch
      %9 = sbr.rel (0) target = $region5
    $region4: #{tpu_custom_call.1} parent=1 // pred_region
      %s11 = ssub.s32 256, 256
      %12 = vsyncadd [#allocation3], %s11
      %s14 = sshll.u32 [#allocation2], 4
      %s15 = int_to_ptr.vmem [resolvable:$true] %s14
      %17 = dma.hbm_to_vmem [thread:$0]  %s0, 256, %s15, [#allocation3]
    $region5: #{tpu_custom_call.1} parent=1 // pred_fallthru
      _
    // Predicated region
    $region6: #{tpu_custom_call.1} parent=1 // pred_check
      _
    $region7: #{tpu_custom_call.1} parent=1 // pred_check_branch
      %19 = sbr.rel (0) target = $region9
    $region8: #{tpu_custom_call.1} parent=1 // pred_region
      %20 = dma.done [#allocation3], 256
    $region9: #{tpu_custom_call.1} parent=1 // pred_fallthru
      _
    %v21 = vld [vmem:[#allocation2] sm:$0xff]
    %v22 = vld [vmem:[#allocation2 + $0x8] sm:$0xff]
    %23 = vst [vmem:[#allocation5] sm:$0xff] %v21
    %24 = vst [vmem:[#allocation5 + $0x8] sm:$0xff] %v22
    // Predicated region
    $region10: #{tpu_custom_call.1} parent=1 // pred_check
      _
    $region11: #{tpu_custom_call.1} parent=1 // pred_check_branch
      %26 = sbr.rel (0) target = $region13
    $region12: #{tpu_custom_call.1} parent=1 // pred_region
      %s28 = ssub.s32 256, 256
      %29 = vsyncadd [#allocation4], %s28
      %s31 = sshll.u32 [#allocation5], 4
      %s32 = int_to_ptr.vmem [resolvable:$true] %s31
      %34 = dma.vmem_to_hbm [thread:$0]  %s32, 256, %s1, [#allocation4]
    $region13: #{tpu_custom_call.1} parent=1 // pred_fallthru
      _
    // Predicated region
    $region14: #{tpu_custom_call.1} parent=1 // pred_check
      _
    $region15: #{tpu_custom_call.1} parent=1 // pred_check_branch
      %36 = sbr.rel (0) target = $region17
    $region16: #{tpu_custom_call.1} parent=1 // pred_region
      %37 = dma.done [#allocation4], 256
    $region17: #{tpu_custom_call.1} parent=1 // pred_fallthru
      _
    %38 = vsyncpa [#allocation3], 1
    %39 = vsyncpa [#allocation4], 1

</llo_original>
